<compile_context>
chip_gen: v7x
topology: tpu7x:2x2x1
jax: 0.10.0
libtpu: 0.0.40
codegen_flags: <defaults>
</compile_context>

<pallas_src>
import jax
import jax.numpy as jnp
from jax.experimental import pallas as pl
from jax.experimental.pallas import tpu as pltpu


def _round_up(x, m):
    return ((x + m - 1) // m) * m


def _pad2d(x, rows, cols):
    r, c = x.shape
    if r == rows and c == cols:
        return x
    return jnp.pad(x, ((0, rows - r), (0, cols - c)))


def _fold_to_8x128(x):
    """Fold a (rows, cols) f32 tile (rows % 8 == 0, cols % 128 == 0) into an
    (8, 128) partial-sum slab using only VPU adds and (8,128)-aligned static
    slices (no reshapes, no cross-lane reduces)."""
    rows, cols = x.shape
    part = x[0:8, :]
    for r in range(8, rows, 8):
        part = part + x[r:r + 8, :]
    acc = part[:, 0:128]
    for g in range(128, cols, 128):
        acc = acc + part[:, g:g + 128]
    return acc


def _capsule_loss_kernel(labels_ref, logits_ref, x_ref, r_ref, out_ref):
    j = pl.program_id(1)  # D-tile index (reduction axis, innermost)

    # First D step for this batch tile: initialize the resident accumulator
    # with the margin-loss contribution (labels/logits blocks are resident
    # across the whole D loop, so this is computed exactly once per batch tile).
    @pl.when(j == 0)
    def _init_with_margin():
        labels = labels_ref[...].astype(jnp.float32)
        logits = logits_ref[...].astype(jnp.float32)
        left = jnp.maximum(0.9 - logits, 0.0)
        right = jnp.maximum(logits - 0.1, 0.0)
        margin = labels * (left * left) + 0.5 * (1.0 - labels) * (right * right)
        out_ref[...] = _fold_to_8x128(margin)[None]

    # Reconstruction term for this (batch-tile, D-tile) block, pre-scaled by
    # 0.0005 and folded elementwise into the (8,128) accumulator.
    diff = x_ref[...].astype(jnp.float32) - r_ref[...].astype(jnp.float32)
    out_ref[...] += (0.0005 * _fold_to_8x128(diff * diff))[None]


def capsule_loss(inputs, labels, logits, recons):
    """Pallas implementation of CapsuleLoss.forward.

    inputs: (B, C, H, W) NCHW
    labels: (B, K) one-hot (or soft) labels
    logits: (B, K) capsule lengths
    recons: (B, C*H*W) reconstruction
    Returns a scalar float32 loss.
    """
    batch_size = inputs.shape[0]
    inputs_flat = inputs.reshape(batch_size, -1)  # same as torch .view(B, -1)
    assert inputs_flat.shape == recons.shape, (inputs_flat.shape, recons.shape)
    assert labels.shape == logits.shape
    D = inputs_flat.shape[1]
    K = labels.shape[1]

    # ---- tile selection: last two dims aligned to (8, 128) ----
    Bp = _round_up(batch_size, 8)
    tb = 8
    for cand in (256, 128, 64, 32, 16, 8):   # ~1 MiB/buffer at td=1024
        if Bp % cand == 0:
            tb = cand
            break
    if D <= 2048:
        td = _round_up(D, 128)
        Dp = td
    else:
        td = 1024 if D % 1024 == 0 else 512
        Dp = _round_up(D, td)
    Kp = _round_up(K, 128)

    nb = Bp // tb
    nd = Dp // td

    # Zero padding contributes exactly 0 to both margin and recon terms.
    labels_p = _pad2d(labels, Bp, Kp)
    logits_p = _pad2d(logits, Bp, Kp)
    x_p = _pad2d(inputs_flat, Bp, Dp)
    r_p = _pad2d(recons, Bp, Dp)

    # VMEM budget: double-buffered streamed operands + resident margin blocks,
    # with headroom; capped at 32 MiB so it fits v7x's 64 MiB physical VMEM.
    tile_bytes = 2 * (2 * tb * td * 4 + 2 * tb * Kp * 4) + 2 * 8 * 128 * 4
    vmem_limit = int(min(max(tile_bytes + (8 << 20), 16 << 20), 32 << 20))

    cost = pl.CostEstimate(
        flops=int(5 * Bp * Dp + 8 * Bp * Kp),
        transcendentals=0,
        bytes_accessed=int(4 * (2 * Bp * Dp + 2 * Bp * Kp + nb * 8 * 128)),
    )

    out = pl.pallas_call(
        _capsule_loss_kernel,
        out_shape=jax.ShapeDtypeStruct((nb, 8, 128), jnp.float32),
        grid=(nb, nd),
        in_specs=[
            pl.BlockSpec((tb, Kp), lambda i, j: (i, 0)),  # labels: resident over D
            pl.BlockSpec((tb, Kp), lambda i, j: (i, 0)),  # logits: resident over D
            pl.BlockSpec((tb, td), lambda i, j: (i, j)),  # inputs_flat: streamed
            pl.BlockSpec((tb, td), lambda i, j: (i, j)),  # recons: streamed
        ],
        out_specs=pl.BlockSpec((1, 8, 128), lambda i, j: (i, 0, 0)),
        compiler_params=pltpu.CompilerParams(
            dimension_semantics=("parallel", "arbitrary"),
            vmem_limit_bytes=vmem_limit,
        ),
        cost_estimate=cost,
    )(labels_p, logits_p, x_p, r_p)

    # Tiny finalize in plain JAX: cross-lane reduce of (nb, 8, 128) partials.
    return jnp.sum(out) / jnp.float32(batch_size)


def _reference_loss(inputs, labels, logits, recons):
    """Pure-JAX reference mirroring the PyTorch module."""
    batch_size = inputs.shape[0]
    left = jnp.maximum(0.9 - logits, 0.0) ** 2
    right = jnp.maximum(logits - 0.1, 0.0) ** 2
    margin_loss = jnp.sum(labels * left + 0.5 * (1.0 - labels) * right)
    recons_loss = jnp.sum((inputs.reshape(batch_size, -1) - recons) ** 2)
    return (margin_loss + 0.0005 * recons_loss) / batch_size


if __name__ == "__main__":
    key = jax.random.PRNGKey(0)
    k1, k2, k3, k4 = jax.random.split(key, 4)

    B, C, H, W = 2, 4, 16, 16
    NUM_CLASSES = 8
    D = C * H * W

    inputs = jax.random.uniform(k1, (B, C, H, W), dtype=jnp.float32)      # NCHW
    # one-hot labels
    cls = jax.random.randint(k2, (B,), 0, NUM_CLASSES)
    labels = jax.nn.one_hot(cls, NUM_CLASSES, dtype=jnp.float32)
    # capsule logits in [0, 1] (capsule lengths)
    logits = jax.random.uniform(k3, (B, NUM_CLASSES), dtype=jnp.float32)
    recons = jax.random.uniform(k4, (B, D), dtype=jnp.float32)

    loss = capsule_loss(inputs, labels, logits, recons)
    loss = jax.block_until_ready(loss)

    ref = _reference_loss(inputs, labels, logits, recons)
    assert jnp.allclose(loss, ref, rtol=1e-5, atol=1e-5), (loss, ref)

    print("KERNEL_OK")
</pallas_src>

<mosaic_0001>
module attributes {stable_mosaic.version = 11 : i64} {
  func.func @_capsule_loss_kernel(%arg0: i32, %arg1: i32, %arg2: memref<8x128xf32, #tpu.memory_space<vmem>>, %arg3: memref<8x128xf32, #tpu.memory_space<vmem>>, %arg4: memref<8x1024xf32, #tpu.memory_space<vmem>>, %arg5: memref<8x1024xf32, #tpu.memory_space<vmem>>, %arg6: memref<1x8x128xf32, #tpu.memory_space<vmem>>) attributes {dimension_semantics = [#tpu.dimension_semantics<parallel>, #tpu.dimension_semantics<arbitrary>], iteration_bounds = array<i64: 1, 1>, scalar_prefetch = 0 : i64, scratch_operands = 0 : i64, tpu.core_type = #tpu.core_type<tc>, window_params = [{transform_indices = @transform_0, window_bounds = array<i64: 8, 128>}, {transform_indices = @transform_1, window_bounds = array<i64: 8, 128>}, {transform_indices = @transform_2, window_bounds = array<i64: 8, 1024>}, {transform_indices = @transform_3, window_bounds = array<i64: 8, 1024>}, {transform_indices = @transform_4, window_bounds = array<i64: 1, 8, 128>}]} {
    %c0_i32 = arith.constant 0 : i32
    %0 = arith.cmpi eq, %arg1, %c0_i32 : i32
    %1 = arith.extui %0 : i1 to i32
    %c0_i32_0 = arith.constant 0 : i32
    %2 = arith.cmpi ne, %1, %c0_i32_0 : i32
    scf.if %2 {
      %c0_10 = arith.constant 0 : index
      %c0_11 = arith.constant 0 : index
      %28 = vector.load %arg2[%c0_10, %c0_11] : memref<8x128xf32, #tpu.memory_space<vmem>>, vector<8x128xf32>
      %c0_12 = arith.constant 0 : index
      %c0_13 = arith.constant 0 : index
      %29 = vector.load %arg3[%c0_12, %c0_13] : memref<8x128xf32, #tpu.memory_space<vmem>>, vector<8x128xf32>
      %cst_14 = arith.constant 0.899999976 : f32
      %30 = vector.broadcast %cst_14 : f32 to vector<8x128xf32>
      %31 = arith.subf %30, %29 : vector<8x128xf32>
      %cst_15 = arith.constant 0.000000e+00 : f32
      %32 = vector.broadcast %cst_15 : f32 to vector<8x128xf32>
      %33 = arith.maximumf %31, %32 : vector<8x128xf32>
      %cst_16 = arith.constant 1.000000e-01 : f32
      %34 = vector.broadcast %cst_16 : f32 to vector<8x128xf32>
      %35 = arith.subf %29, %34 : vector<8x128xf32>
      %cst_17 = arith.constant 0.000000e+00 : f32
      %36 = vector.broadcast %cst_17 : f32 to vector<8x128xf32>
      %37 = arith.maximumf %35, %36 : vector<8x128xf32>
      %38 = arith.mulf %33, %33 : vector<8x128xf32>
      %39 = arith.mulf %28, %38 : vector<8x128xf32>
      %cst_18 = arith.constant 1.000000e+00 : f32
      %40 = vector.broadcast %cst_18 : f32 to vector<8x128xf32>
      %41 = arith.subf %40, %28 : vector<8x128xf32>
      %cst_19 = arith.constant 5.000000e-01 : f32
      %42 = vector.broadcast %cst_19 : f32 to vector<8x128xf32>
      %43 = arith.mulf %42, %41 : vector<8x128xf32>
      %44 = arith.mulf %37, %37 : vector<8x128xf32>
      %45 = arith.mulf %43, %44 : vector<8x128xf32>
      %46 = arith.addf %39, %45 : vector<8x128xf32>
      %47 = vector.shape_cast %46 : vector<8x128xf32> to vector<1x8x128xf32>
      %c0_20 = arith.constant 0 : index
      %c0_21 = arith.constant 0 : index
      %c0_22 = arith.constant 0 : index
      %48 = vector.load %arg6[%c0_20, %c0_21, %c0_22] : memref<1x8x128xf32, #tpu.memory_space<vmem>>, vector<1x8x128xf32>
      tpu.vector_store %arg6[%c0_20, %c0_21, %c0_22], %47 {strides = array<i32>} : memref<1x8x128xf32, #tpu.memory_space<vmem>>, vector<1x8x128xf32>,
    } else {
    }
    %c0 = arith.constant 0 : index
    %c0_1 = arith.constant 0 : index
    %3 = vector.load %arg4[%c0, %c0_1] : memref<8x1024xf32, #tpu.memory_space<vmem>>, vector<8x1024xf32>
    %c0_2 = arith.constant 0 : index
    %c0_3 = arith.constant 0 : index
    %4 = vector.load %arg5[%c0_2, %c0_3] : memref<8x1024xf32, #tpu.memory_space<vmem>>, vector<8x1024xf32>
    %5 = arith.subf %3, %4 : vector<8x1024xf32>
    %c0_4 = arith.constant 0 : index
    %c0_5 = arith.constant 0 : index
    %c0_6 = arith.constant 0 : index
    %6 = vector.load %arg6[%c0_4, %c0_5, %c0_6] : memref<1x8x128xf32, #tpu.memory_space<vmem>>, vector<1x8x128xf32>
    %7 = arith.mulf %5, %5 : vector<8x1024xf32>
    %8 = vector.extract_strided_slice %7 {offsets = [0, 0], sizes = [8, 128], strides = [1, 1]} : vector<8x1024xf32> to vector<8x128xf32>
    %9 = vector.extract_strided_slice %7 {offsets = [0, 128], sizes = [8, 128], strides = [1, 1]} : vector<8x1024xf32> to vector<8x128xf32>
    %10 = arith.addf %8, %9 : vector<8x128xf32>
    %11 = vector.extract_strided_slice %7 {offsets = [0, 256], sizes = [8, 128], strides = [1, 1]} : vector<8x1024xf32> to vector<8x128xf32>
    %12 = arith.addf %10, %11 : vector<8x128xf32>
    %13 = vector.extract_strided_slice %7 {offsets = [0, 384], sizes = [8, 128], strides = [1, 1]} : vector<8x1024xf32> to vector<8x128xf32>
    %14 = arith.addf %12, %13 : vector<8x128xf32>
    %15 = vector.extract_strided_slice %7 {offsets = [0, 512], sizes = [8, 128], strides = [1, 1]} : vector<8x1024xf32> to vector<8x128xf32>
    %16 = arith.addf %14, %15 : vector<8x128xf32>
    %17 = vector.extract_strided_slice %7 {offsets = [0, 640], sizes = [8, 128], strides = [1, 1]} : vector<8x1024xf32> to vector<8x128xf32>
    %18 = arith.addf %16, %17 : vector<8x128xf32>
    %19 = vector.extract_strided_slice %7 {offsets = [0, 768], sizes = [8, 128], strides = [1, 1]} : vector<8x1024xf32> to vector<8x128xf32>
    %20 = arith.addf %18, %19 : vector<8x128xf32>
    %21 = vector.extract_strided_slice %7 {offsets = [0, 896], sizes = [8, 128], strides = [1, 1]} : vector<8x1024xf32> to vector<8x128xf32>
    %22 = arith.addf %20, %21 : vector<8x128xf32>
    %cst = arith.constant 5.000000e-04 : f32
    %23 = vector.broadcast %cst : f32 to vector<8x128xf32>
    %24 = arith.mulf %23, %22 : vector<8x128xf32>
    %25 = vector.shape_cast %24 : vector<8x128xf32> to vector<1x8x128xf32>
    %26 = arith.addf %6, %25 : vector<1x8x128xf32>
    %c0_7 = arith.constant 0 : index
    %c0_8 = arith.constant 0 : index
    %c0_9 = arith.constant 0 : index
    %27 = vector.load %arg6[%c0_7, %c0_8, %c0_9] : memref<1x8x128xf32, #tpu.memory_space<vmem>>, vector<1x8x128xf32>
    tpu.vector_store %arg6[%c0_7, %c0_8, %c0_9], %26 {strides = array<i32>} : memref<1x8x128xf32, #tpu.memory_space<vmem>>, vector<1x8x128xf32>,
    return
  }
  func.func @transform_0(%arg0: i32, %arg1: i32) -> (i32, i32) {
    %c0_i32 = arith.constant 0 : i32
    %c0_i32_0 = arith.constant 0 : i32
    return %arg0, %c0_i32 : i32, i32
  }
  func.func @transform_1(%arg0: i32, %arg1: i32) -> (i32, i32) {
    %c0_i32 = arith.constant 0 : i32
    %c0_i32_0 = arith.constant 0 : i32
    return %arg0, %c0_i32 : i32, i32
  }
  func.func @transform_2(%arg0: i32, %arg1: i32) -> (i32, i32) {
    %c0_i32 = arith.constant 0 : i32
    return %arg0, %arg1 : i32, i32
  }
  func.func @transform_3(%arg0: i32, %arg1: i32) -> (i32, i32) {
    %c0_i32 = arith.constant 0 : i32
    return %arg0, %arg1 : i32, i32
  }
  func.func @transform_4(%arg0: i32, %arg1: i32) -> (i32, i32, i32) {
    %c0_i32 = arith.constant 0 : i32
    %c0_i32_0 = arith.constant 0 : i32
    %c0_i32_1 = arith.constant 0 : i32
    return %arg0, %c0_i32, %c0_i32_0 : i32, i32, i32
  }
}

</mosaic_0001>

<llo_original>
// kernel: tpu_custom_call.1
$region0: #{tpu_custom_call.1}
  #allocation0 [shape = 'u32[]', space=smem, size = 0x4, offset = 0x4, fixed_abs, tag = 'smem constant byte address 0x4 - core index']
  #allocation1 [shape = 'u32[144,128]{1,0:T(1,128)}', space=vmem, size = 0x12000, scoped, tag = 'internal scratch']
  %s0 = inlined_call_operand.hbm [shape: f32[8,128], index: 0, kind: input, shape index: {}]
  %s1 = inlined_call_operand.hbm [shape: f32[8,128], index: 1, kind: input, shape index: {}]
  %s2 = inlined_call_operand.hbm [shape: f32[8,1024], index: 2, kind: input, shape index: {}]
  %s3 = inlined_call_operand.hbm [shape: f32[8,1024], index: 3, kind: input, shape index: {}]
  %s4 = inlined_call_operand.hbm [shape: f32[1,8,128], index: 4, kind: output, shape index: {}]
  %s5 = sld [smem:[#allocation0]]
  $region46: #{tpu_custom_call.1} parent=0
    _
  %s7 = ssub.s32 1, %s5
  %s8 = scalar_select 0, %s7, %s5
  $region1: #{tpu_custom_call.1} parent=0
    #allocation2 [shape = 'u8[4096]{0}', space=vmem, size = 0x1000, scoped, tag = 'input window, operand 0, single buffered']
    #allocation3 [shape = 's32[1]{0}', space=sflag, size = 0x4, scoped, tag = 'scoped memory for tpu_custom_call.1']
    #allocation4 [shape = 's32[1]{0}', space=sflag, size = 0x4, scoped, tag = 'scoped memory for tpu_custom_call.1']
    #allocation5 [shape = 'u8[4096]{0}', space=vmem, size = 0x1000, scoped, tag = 'input window, operand 1, single buffered']
    #allocation6 [shape = 's32[1]{0}', space=sflag, size = 0x4, scoped, tag = 'scoped memory for tpu_custom_call.1']
    #allocation7 [shape = 'u8[32768]{0}', space=vmem, size = 0x8000, scoped, tag = 'input window, operand 2, single buffered']
    #allocation8 [shape = 'u8[32768]{0}', space=vmem, size = 0x8000, scoped, tag = 'input window, operand 3, single buffered']
    #allocation9 [shape = 's32[1]{0}', space=sflag, size = 0x4, scoped, tag = 'scoped memory for tpu_custom_call.1']
    #allocation10 [shape = 'u8[4096]{0}', space=vmem, size = 0x1000, scoped, tag = 'output window, operand 0, single buffered']
    %9 = vsyncpa [#allocation3], 0
    %10 = vsyncpa [#allocation6], 0
    %11 = vsyncpa [#allocation9], 0
    %12 = vsyncpa [#allocation4], 0
    // Predicated region
    $region2: #{tpu_custom_call.1} parent=1 // pred_check
      _
    $region3: #{tpu_custom_call.1} parent=1 // pred_check_branch
      %14 = sbr.rel (0) target = $region5
    $region4: #{tpu_custom_call.1} parent=1 // pred_region
      %s16 = ssub.s32 128, 128
      %17 = vsyncadd [#allocation3], %s16
      %s19 = sshll.u32 [#allocation2], 4
      %s20 = int_to_ptr.vmem [resolvable:$true] %s19
      %22 = dma.hbm_to_vmem [thread:$0]  %s0, 128, %s20, [#allocation3]
    $region5: #{tpu_custom_call.1} parent=1 // pred_fallthru
      _
    // Predicated region
    $region6: #{tpu_custom_call.1} parent=1 // pred_check
      _
    $region7: #{tpu_custom_call.1} parent=1 // pred_check_branch
      %24 = sbr.rel (0) target = $region9
    $region8: #{tpu_custom_call.1} parent=1 // pred_region
      %s26 = ssub.s32 128, 128
      %27 = vsyncadd [#allocation6], %s26
      %s29 = sshll.u32 [#allocation5], 4
      %s30 = int_to_ptr.vmem [resolvable:$true] %s29
      %32 = dma.hbm_to_vmem [thread:$0]  %s1, 128, %s30, [#allocation6]
    $region9: #{tpu_custom_call.1} parent=1 // pred_fallthru
      _
    // Predicated region
    $region10: #{tpu_custom_call.1} parent=1 // pred_check
      _
    $region11: #{tpu_custom_call.1} parent=1 // pred_check_branch
      %34 = sbr.rel (0) target = $region13
    $region12: #{tpu_custom_call.1} parent=1 // pred_region
      %s36 = ssub.s32 1024, 1024
      %37 = vsyncadd [#allocation6], %s36
      %s39 = sshll.u32 [#allocation7], 4
      %s40 = int_to_ptr.vmem [resolvable:$true] %s39
      %42 = dma.hbm_to_vmem [thread:$0]  %s2, 1024, %s40, [#allocation6]
    $region13: #{tpu_custom_call.1} parent=1 // pred_fallthru
      _
    // Predicated region
    $region14: #{tpu_custom_call.1} parent=1 // pred_check
      _
    $region15: #{tpu_custom_call.1} parent=1 // pred_check_branch
      %44 = sbr.rel (0) target = $region17
    $region16: #{tpu_custom_call.1} parent=1 // pred_region
      %s46 = ssub.s32 1024, 1024
      %47 = vsyncadd [#allocation9], %s46
      %s49 = sshll.u32 [#allocation8], 4
      %s50 = int_to_ptr.vmem [resolvable:$true] %s49
      %52 = dma.hbm_to_vmem [thread:$0]  %s3, 1024, %s50, [#allocation9]
    $region17: #{tpu_custom_call.1} parent=1 // pred_fallthru
      _
    // Predicated region
    $region18: #{tpu_custom_call.1} parent=1 // pred_check
      _
    $region19: #{tpu_custom_call.1} parent=1 // pred_check_branch
      %54 = sbr.rel (0) target = $region21
    $region20: #{tpu_custom_call.1} parent=1 // pred_region
      %55 = dma.done [#allocation3], 128
    $region21: #{tpu_custom_call.1} parent=1 // pred_fallthru
      _
    // Predicated region
    $region22: #{tpu_custom_call.1} parent=1 // pred_check
      _
    $region23: #{tpu_custom_call.1} parent=1 // pred_check_branch
      %57 = sbr.rel (0) target = $region25
    $region24: #{tpu_custom_call.1} parent=1 // pred_region
      %58 = dma.done [#allocation6], 128
    $region25: #{tpu_custom_call.1} parent=1 // pred_fallthru
      _
    // Predicated region
    $region26: #{tpu_custom_call.1} parent=1 // pred_check
      _
    $region27: #{tpu_custom_call.1} parent=1 // pred_check_branch
      %60 = sbr.rel (0) target = $region29
    $region28: #{tpu_custom_call.1} parent=1 // pred_region
      %61 = dma.done [#allocation6], 1024
    $region29: #{tpu_custom_call.1} parent=1 // pred_fallthru
      _
    // Predicated region
    $region30: #{tpu_custom_call.1} parent=1 // pred_check
      _
    $region31: #{tpu_custom_call.1} parent=1 // pred_check_branch
      %63 = sbr.rel (0) target = $region33
    $region32: #{tpu_custom_call.1} parent=1 // pred_region
      %64 = dma.done [#allocation9], 1024
    $region33: #{tpu_custom_call.1} parent=1 // pred_fallthru
      _
    %p65 = scmp.eq.s32.totalorder 0, 0
    // Predicated region
    $region34: #{tpu_custom_call.1} parent=1 // pred_check
      %p66 = pneg %p65
    $region35: #{tpu_custom_call.1} parent=1 // pred_check_branch
      %68 = sbr.rel (%p66) target = $region37
    $region36: #{tpu_custom_call.1} parent=1 // pred_region
      %v69 = vld [vmem:[#allocation2] sm:$0xff]
      %v70 = vld [vmem:[#allocation5] sm:$0xff]
      %v71 = vsub.f32 0.9, %v70
      %v72 = vmax.f32 %v71, 0.0
      %v73 = vsub.f32 %v70, 0.1
      %v74 = vmax.f32 %v73, 0.0
      %v75 = vmul.f32 %v72, %v72
      %v76 = vmul.f32 %v69, %v75
      %v77 = vsub.f32 1.0, %v69
      %v78 = vmul.f32 %v77, 0.5
      %v79 = vmul.f32 %v74, %v74
      %v80 = vmul.f32 %v78, %v79
      %v81 = vadd.f32 %v76, %v80
      %82 = vst [vmem:[#allocation10] sm:$0xff] %v81
    $region37: #{tpu_custom_call.1} parent=1 // pred_fallthru
      _
    %v83 = vld [vmem:[#allocation7] sm:$0xff]
    %v84 = vld [vmem:[#allocation7 + $0x8] sm:$0xff]
    %v85 = vld [vmem:[#allocation7 + $0x10] sm:$0xff]
    %v86 = vld [vmem:[#allocation7 + $0x18] sm:$0xff]
    %v87 = vld [vmem:[#allocation7 + $0x20] sm:$0xff]
    %v88 = vld [vmem:[#allocation7 + $0x28] sm:$0xff]
    %v89 = vld [vmem:[#allocation7 + $0x30] sm:$0xff]
    %v90 = vld [vmem:[#allocation7 + $0x38] sm:$0xff]
    %v91 = vld [vmem:[#allocation8] sm:$0xff]
    %v92 = vld [vmem:[#allocation8 + $0x8] sm:$0xff]
    %v93 = vld [vmem:[#allocation8 + $0x10] sm:$0xff]
    %v94 = vld [vmem:[#allocation8 + $0x18] sm:$0xff]
    %v95 = vld [vmem:[#allocation8 + $0x20] sm:$0xff]
    %v96 = vld [vmem:[#allocation8 + $0x28] sm:$0xff]
    %v97 = vld [vmem:[#allocation8 + $0x30] sm:$0xff]
    %v98 = vld [vmem:[#allocation8 + $0x38] sm:$0xff]
    %v99 = vsub.f32 %v83, %v91
    %v100 = vsub.f32 %v84, %v92
    %v101 = vsub.f32 %v85, %v93
    %v102 = vsub.f32 %v86, %v94
    %v103 = vsub.f32 %v87, %v95
    %v104 = vsub.f32 %v88, %v96
    %v105 = vsub.f32 %v89, %v97
    %v106 = vsub.f32 %v90, %v98
    %v107 = vld [vmem:[#allocation10] sm:$0xff]
    %v108 = vmul.f32 %v99, %v99
    %v109 = vmul.f32 %v100, %v100
    %v110 = vmul.f32 %v101, %v101
    %v111 = vmul.f32 %v102, %v102
    %v112 = vmul.f32 %v103, %v103
    %v113 = vmul.f32 %v104, %v104
    %v114 = vmul.f32 %v105, %v105
    %v115 = vmul.f32 %v106, %v106
    %v116 = vadd.f32 %v108, %v109
    %v117 = vadd.f32 %v116, %v110
    %v118 = vadd.f32 %v117, %v111
    %v119 = vadd.f32 %v118, %v112
    %v120 = vadd.f32 %v119, %v113
    %v121 = vadd.f32 %v120, %v114
    %v122 = vadd.f32 %v121, %v115
    %v123 = vmul.f32 %v122, 0.0005
    %v124 = vadd.f32 %v107, %v123
    %125 = vst [vmem:[#allocation10] sm:$0xff] %v124
    // Predicated region
    $region38: #{tpu_custom_call.1} parent=1 // pred_check
      _
    $region39: #{tpu_custom_call.1} parent=1 // pred_check_branch
      %127 = sbr.rel (0) target = $region41
    $region40: #{tpu_custom_call.1} parent=1 // pred_region
      %s129 = ssub.s32 128, 128
      %130 = vsyncadd [#allocation4], %s129
      %s132 = sshll.u32 [#allocation10], 4
      %s133 = int_to_ptr.vmem [resolvable:$true] %s132
      %135 = dma.vmem_to_hbm [thread:$0]  %s133, 128, %s4, [#allocation4]
    $region41: #{tpu_custom_call.1} parent=1 // pred_fallthru
      _
    // Predicated region
    $region42: #{tpu_custom_call.1} parent=1 // pred_check
      _
    $region43: #{tpu_custom_call.1} parent=1 // pred_check_branch
      %137 = sbr.rel (0) target = $region45
    $region44: #{tpu_custom_call.1} parent=1 // pred_region
      %138 = dma.done [#allocation4], 128
    $region45: #{tpu_custom_call.1} parent=1 // pred_fallthru
      _
    %139 = vsyncpa [#allocation3], 1
    %140 = vsyncpa [#allocation6], 1
    %141 = vsyncpa [#allocation9], 1
    %142 = vsyncpa [#allocation4], 1

</llo_original>
